<compile_context>
chip_gen: v7x
topology: tpu7x:2x2x1
jax: 0.10.0
libtpu: 0.0.40
codegen_flags: <defaults>
</compile_context>

<pallas_src>
import functools

import jax
import jax.numpy as jnp
from jax import lax
from jax.experimental import pallas as pl
from jax.experimental.pallas import tpu as pltpu

LANE = 128
TM_MAX = 1024


def _round_up(a, b):
    return (a + b - 1) // b * b


def _pad2(a, rows, cols):
    a = jnp.asarray(a, jnp.float32)
    return jnp.pad(a, ((0, rows - a.shape[0]), (0, cols - a.shape[1])))


def _elu(y):
    # F.elu (alpha=1): y if y > 0 else exp(y) - 1.  No clamp: the overflowed exp branch
    # is discarded by the where (forward-only; a VJP through this would need the clamp).
    return jnp.where(y > 0, y, jnp.exp(y) - 1.0)


def _darionet_kernel(x_ref, tconv_ref, bconv_ref, w1_ref, b1_ref, w2_ref, b2_ref,
                     w3_ref, b3_ref, wo_ref, bo_ref, out_ref):
    # Normalization is folded into the Toeplitz conv matrix/bias during packing, so the
    # first op is already the conv matmul (MXU) + bias + ELU.
    h = _elu(jnp.dot(x_ref[...], tconv_ref[...],
                     preferred_element_type=jnp.float32) + bconv_ref[...])
    # fc1 -> fc2 -> fc3, each matmul (MXU, f32 accumulate) + bias + ELU (VPU/EUP).
    h = _elu(jnp.dot(h, w1_ref[...], preferred_element_type=jnp.float32) + b1_ref[...])
    h = _elu(jnp.dot(h, w2_ref[...], preferred_element_type=jnp.float32) + b2_ref[...])
    h = _elu(jnp.dot(h, w3_ref[...], preferred_element_type=jnp.float32) + b3_ref[...])
    # TODO(synk): training-mode ManualDropout (pltpu.prng_random_bits mask); eval mode => identity.
    out_ref[...] = jnp.dot(h, wo_ref[...], preferred_element_type=jnp.float32) + bo_ref[...]


def prepare_darionet_params(mean, std, conv_w, conv_b, w1, b1, w2, b2, w3, b3, wo, bo):
    """One-time weight packing: Toeplitz conv fold, normalization fold, transposes and
    lane padding.  Run once; the per-call path is then just the fused pallas_call."""
    L = w1.shape[1]                # input_dims (conv1d_dims)
    K = conv_w.shape[-1]
    out_dims = wo.shape[0]
    Lp = _round_up(L, LANE)        # conv-output / fc1-input lane width
    Dp = _round_up(max(w1.shape[0], w2.shape[0], w3.shape[0], out_dims), LANE)

    mean = jnp.broadcast_to(jnp.asarray(mean, jnp.float32).reshape(-1), (L,))
    std = jnp.broadcast_to(jnp.asarray(std, jnp.float32).reshape(-1), (L,))
    istd = 1.0 / std

    # Conv1d(1->1, stride=1, padding='same', odd K) as a Toeplitz matrix: conv(xn) = xn @ T.
    pad_left = (K - 1) // 2
    w1d = jnp.asarray(conv_w, jnp.float32).reshape(K)
    ii = jnp.arange(L)[:, None]    # input position
    jj = jnp.arange(L)[None, :]    # output position
    kk = ii - jj + pad_left
    T = jnp.where((kk >= 0) & (kk < K), w1d[jnp.clip(kk, 0, K - 1)], 0.0)      # (L, L)

    # Fold normalization: ((x - mean)/std) @ T + b == x @ (diag(1/std) T) + (b - (mean/std) @ T)
    Tn = istd[:, None] * T
    bconv = jnp.asarray(conv_b, jnp.float32).reshape(()) - (mean * istd) @ T   # (L,)

    packed = (
        _pad2(Tn, L, Lp),                                    # folded conv (L, Lp)
        _pad2(bconv.reshape(1, L), 1, Lp),                   # folded conv bias (1, Lp)
        _pad2(jnp.asarray(w1, jnp.float32).T, Lp, Dp),       # fc1
        _pad2(jnp.asarray(b1, jnp.float32).reshape(1, -1), 1, Dp),
        _pad2(jnp.asarray(w2, jnp.float32).T, Dp, Dp),       # fc2
        _pad2(jnp.asarray(b2, jnp.float32).reshape(1, -1), 1, Dp),
        _pad2(jnp.asarray(w3, jnp.float32).T, Dp, Dp),       # fc3
        _pad2(jnp.asarray(b3, jnp.float32).reshape(1, -1), 1, Dp),
        _pad2(jnp.asarray(wo, jnp.float32).T, Dp, Dp),       # output layer
        _pad2(jnp.asarray(bo, jnp.float32).reshape(1, -1), 1, Dp),
    )
    return {"out_dims": out_dims, "packed": packed}


@functools.partial(jax.jit, static_argnums=(0,))
def _darionet_call(out_dims, x, tconv, bconv, w1p, b1p, w2p, b2p, w3p, b3p, wop, bop):
    x2d = x.reshape(x.shape[0], -1)            # (N, 1, L) -> (N, L), no copy
    N, L = x2d.shape
    Lp = tconv.shape[1]
    Dp = w1p.shape[1]

    # Row tile: big enough to amortize per-grid-step overhead, >= 2 steps when possible
    # so "parallel" splits across v7x's 2 TCs, and for tiny N a single full-extent block
    # (no padded HBM copy of x; ragged last block handled by Pallas).
    if N < 16:
        TM = N
    else:
        TM = min(TM_MAX, _round_up(pl.cdiv(N, 2), 8))
    grid = pl.cdiv(N, TM)

    def const_spec(shape):
        return pl.BlockSpec(shape, lambda i: (0, 0))

    flops = 2 * N * (L * Lp + Lp * Dp + 3 * Dp * Dp)
    bytes_accessed = 4 * (N * L + N * Dp + L * Lp + Lp * Dp + 3 * Dp * Dp
                          + 2 * Lp + 4 * Dp)
    cost = pl.CostEstimate(flops=flops,
                           transcendentals=N * (Lp + 3 * Dp),
                           bytes_accessed=bytes_accessed)

    out = pl.pallas_call(
        _darionet_kernel,
        out_shape=jax.ShapeDtypeStruct((N, Dp), jnp.float32),
        grid=(grid,),
        in_specs=[
            pl.BlockSpec((TM, L), lambda i: (i, 0)),    # x row tile, natural L lanes
            const_spec((L, Lp)), const_spec((1, Lp)),   # folded conv (norm + Toeplitz)
            const_spec((Lp, Dp)), const_spec((1, Dp)),  # fc1
            const_spec((Dp, Dp)), const_spec((1, Dp)),  # fc2
            const_spec((Dp, Dp)), const_spec((1, Dp)),  # fc3
            const_spec((Dp, Dp)), const_spec((1, Dp)),  # output layer
        ],
        out_specs=pl.BlockSpec((TM, Dp), lambda i: (i, 0)),
        compiler_params=pltpu.CompilerParams(dimension_semantics=("parallel",)),
        cost_estimate=cost,
    )(x2d, tconv, bconv, w1p, b1p, w2p, b2p, w3p, b3p, wop, bop)

    return out[:, :out_dims]


def darionet_forward(x, params):
    """Darionet.forward in eval mode. x: (N, 1, L) f32. Returns (N, out_dims)."""
    return _darionet_call(params["out_dims"], x, *params["packed"])


def _reference(x, mean, std, conv_w, conv_b, w1, b1, w2, b2, w3, b3, wo, bo):
    """Pure-JAX reference matching PyTorch Darionet.forward (eval mode)."""
    xn = (x - jnp.asarray(mean)) / jnp.asarray(std)                 # (N, 1, L)
    h = lax.conv_general_dilated(
        xn, conv_w, window_strides=(1,), padding="SAME",
        dimension_numbers=("NCH", "OIH", "NCH"),
        precision=lax.Precision.HIGHEST) + conv_b.reshape(1, -1, 1)
    h = jax.nn.elu(h)
    h = h.reshape(h.shape[0], -1)
    h = jax.nn.elu(h @ w1.T + b1)
    h = jax.nn.elu(h @ w2.T + b2)
    h = jax.nn.elu(h @ w3.T + b3)
    return h @ wo.T + bo


if __name__ == "__main__":
    # Darionet(filter_size=5, input_dims=32, out_dims=1): fc dims 128 -> 64 -> 16 -> 1.
    L, K, OUT = 32, 5, 1
    FC1, FC2, FC3 = 128, 64, 16

    key = jax.random.PRNGKey(0)
    ks = jax.random.split(key, 13)

    mean = 0.5 * jax.random.normal(ks[1], (L,), dtype=jnp.float32)
    std = 0.5 + jnp.abs(jax.random.normal(ks[2], (L,), dtype=jnp.float32))

    def he(k, shape, fan_in):
        return jax.random.normal(k, shape, dtype=jnp.float32) * jnp.sqrt(2.0 / fan_in)

    conv_w = he(ks[3], (1, 1, K), K)
    conv_b = 0.1 * jax.random.normal(ks[4], (1,), dtype=jnp.float32)
    w1 = he(ks[5], (FC1, L), L)
    b1 = 0.05 * jax.random.normal(ks[6], (FC1,), dtype=jnp.float32)
    w2 = he(ks[7], (FC2, FC1), FC1)
    b2 = 0.05 * jax.random.normal(ks[8], (FC2,), dtype=jnp.float32)
    w3 = he(ks[9], (FC3, FC2), FC2)
    b3 = 0.05 * jax.random.normal(ks[10], (FC3,), dtype=jnp.float32)
    wo = he(ks[11], (OUT, FC3), FC3)
    bo = 0.05 * jax.random.normal(ks[12], (OUT,), dtype=jnp.float32)

    # One-time weight packing (hoisted out of the per-call path).
    params = prepare_darionet_params(mean, std, conv_w, conv_b,
                                     w1, b1, w2, b2, w3, b3, wo, bo)

    ok = True
    for N in (2, 37):   # tiny single-block case + multi-step grid with ragged last tile
        x = jax.random.normal(jax.random.fold_in(ks[0], N), (N, 1, L), dtype=jnp.float32)
        out = jax.block_until_ready(darionet_forward(x, params))
        ref = _reference(x, mean, std, conv_w, conv_b, w1, b1, w2, b2, w3, b3, wo, bo)
        assert out.shape == (N, OUT), out.shape
        max_err = float(jnp.max(jnp.abs(out - ref)))
        scale = float(jnp.max(jnp.abs(ref))) + 1.0
        assert max_err < 2e-2 * scale, f"N={N}: mismatch vs reference: {max_err} (scale {scale})"
        ok = ok and max_err < 2e-2 * scale

    if ok:
        print("KERNEL_OK")
</pallas_src>

<mosaic_0001>
module attributes {stable_mosaic.version = 11 : i64} {
  func.func @_darionet_kernel(%arg0: i32, %arg1: memref<2x32xf32, #tpu.memory_space<vmem>>, %arg2: memref<32x128xf32, #tpu.memory_space<vmem>>, %arg3: memref<1x128xf32, #tpu.memory_space<vmem>>, %arg4: memref<128x128xf32, #tpu.memory_space<vmem>>, %arg5: memref<1x128xf32, #tpu.memory_space<vmem>>, %arg6: memref<128x128xf32, #tpu.memory_space<vmem>>, %arg7: memref<1x128xf32, #tpu.memory_space<vmem>>, %arg8: memref<128x128xf32, #tpu.memory_space<vmem>>, %arg9: memref<1x128xf32, #tpu.memory_space<vmem>>, %arg10: memref<128x128xf32, #tpu.memory_space<vmem>>, %arg11: memref<1x128xf32, #tpu.memory_space<vmem>>, %arg12: memref<2x128xf32, #tpu.memory_space<vmem>>) attributes {dimension_semantics = [#tpu.dimension_semantics<parallel>], iteration_bounds = array<i64: 1>, scalar_prefetch = 0 : i64, scratch_operands = 0 : i64, tpu.core_type = #tpu.core_type<tc>, window_params = [{transform_indices = @transform_0, window_bounds = array<i64: 2, 32>}, {pipeline_mode = #tpu.pipeline_mode<synchronous>, transform_indices = @transform_1, window_bounds = array<i64: 32, 128>}, {pipeline_mode = #tpu.pipeline_mode<synchronous>, transform_indices = @transform_2, window_bounds = array<i64: 1, 128>}, {pipeline_mode = #tpu.pipeline_mode<synchronous>, transform_indices = @transform_3, window_bounds = array<i64: 128, 128>}, {pipeline_mode = #tpu.pipeline_mode<synchronous>, transform_indices = @transform_4, window_bounds = array<i64: 1, 128>}, {pipeline_mode = #tpu.pipeline_mode<synchronous>, transform_indices = @transform_5, window_bounds = array<i64: 128, 128>}, {pipeline_mode = #tpu.pipeline_mode<synchronous>, transform_indices = @transform_6, window_bounds = array<i64: 1, 128>}, {pipeline_mode = #tpu.pipeline_mode<synchronous>, transform_indices = @transform_7, window_bounds = array<i64: 128, 128>}, {pipeline_mode = #tpu.pipeline_mode<synchronous>, transform_indices = @transform_8, window_bounds = array<i64: 1, 128>}, {pipeline_mode = #tpu.pipeline_mode<synchronous>, transform_indices = @transform_9, window_bounds = array<i64: 128, 128>}, {pipeline_mode = #tpu.pipeline_mode<synchronous>, transform_indices = @transform_10, window_bounds = array<i64: 1, 128>}, {transform_indices = @transform_11, window_bounds = array<i64: 2, 128>}]} {
    %c0 = arith.constant 0 : index
    %c0_0 = arith.constant 0 : index
    %0 = vector.load %arg1[%c0, %c0_0] : memref<2x32xf32, #tpu.memory_space<vmem>>, vector<2x32xf32>
    %c0_1 = arith.constant 0 : index
    %c0_2 = arith.constant 0 : index
    %1 = vector.load %arg2[%c0_1, %c0_2] : memref<32x128xf32, #tpu.memory_space<vmem>>, vector<32x128xf32>
    %cst = arith.constant dense<0.000000e+00> : vector<2x128xf32>
    %2 = tpu.matmul %0, %1, %cst {dimension_numbers = #tpu.dot_dimension_numbers<[1], [0], [0], [1], [0, 0, 1, 1], [], []>} : vector<2x32xf32>, vector<32x128xf32>, vector<2x128xf32> -> vector<2x128xf32>
    %c0_3 = arith.constant 0 : index
    %c0_4 = arith.constant 0 : index
    %3 = vector.load %arg3[%c0_3, %c0_4] : memref<1x128xf32, #tpu.memory_space<vmem>>, vector<1x128xf32>
    %4 = vector.broadcast %3 : vector<1x128xf32> to vector<2x128xf32>
    %5 = arith.addf %2, %4 : vector<2x128xf32>
    %cst_5 = arith.constant 0.000000e+00 : f32
    %6 = vector.broadcast %cst_5 : f32 to vector<2x128xf32>
    %7 = arith.cmpf ogt, %5, %6 : vector<2x128xf32>
    %8 = math.exp %5 : vector<2x128xf32>
    %cst_6 = arith.constant 1.000000e+00 : f32
    %9 = vector.broadcast %cst_6 : f32 to vector<2x128xf32>
    %10 = arith.subf %8, %9 : vector<2x128xf32>
    %11 = arith.select %7, %5, %10 : vector<2x128xi1>, vector<2x128xf32>
    %c0_7 = arith.constant 0 : index
    %c0_8 = arith.constant 0 : index
    %12 = vector.load %arg4[%c0_7, %c0_8] : memref<128x128xf32, #tpu.memory_space<vmem>>, vector<128x128xf32>
    %cst_9 = arith.constant dense<0.000000e+00> : vector<2x128xf32>
    %13 = tpu.matmul %11, %12, %cst_9 {dimension_numbers = #tpu.dot_dimension_numbers<[1], [0], [0], [1], [0, 0, 1, 1], [], []>} : vector<2x128xf32>, vector<128x128xf32>, vector<2x128xf32> -> vector<2x128xf32>
    %c0_10 = arith.constant 0 : index
    %c0_11 = arith.constant 0 : index
    %14 = vector.load %arg5[%c0_10, %c0_11] : memref<1x128xf32, #tpu.memory_space<vmem>>, vector<1x128xf32>
    %15 = vector.broadcast %14 : vector<1x128xf32> to vector<2x128xf32>
    %16 = arith.addf %13, %15 : vector<2x128xf32>
    %cst_12 = arith.constant 0.000000e+00 : f32
    %17 = vector.broadcast %cst_12 : f32 to vector<2x128xf32>
    %18 = arith.cmpf ogt, %16, %17 : vector<2x128xf32>
    %19 = math.exp %16 : vector<2x128xf32>
    %cst_13 = arith.constant 1.000000e+00 : f32
    %20 = vector.broadcast %cst_13 : f32 to vector<2x128xf32>
    %21 = arith.subf %19, %20 : vector<2x128xf32>
    %22 = arith.select %18, %16, %21 : vector<2x128xi1>, vector<2x128xf32>
    %c0_14 = arith.constant 0 : index
    %c0_15 = arith.constant 0 : index
    %23 = vector.load %arg6[%c0_14, %c0_15] : memref<128x128xf32, #tpu.memory_space<vmem>>, vector<128x128xf32>
    %cst_16 = arith.constant dense<0.000000e+00> : vector<2x128xf32>
    %24 = tpu.matmul %22, %23, %cst_16 {dimension_numbers = #tpu.dot_dimension_numbers<[1], [0], [0], [1], [0, 0, 1, 1], [], []>} : vector<2x128xf32>, vector<128x128xf32>, vector<2x128xf32> -> vector<2x128xf32>
    %c0_17 = arith.constant 0 : index
    %c0_18 = arith.constant 0 : index
    %25 = vector.load %arg7[%c0_17, %c0_18] : memref<1x128xf32, #tpu.memory_space<vmem>>, vector<1x128xf32>
    %26 = vector.broadcast %25 : vector<1x128xf32> to vector<2x128xf32>
    %27 = arith.addf %24, %26 : vector<2x128xf32>
    %cst_19 = arith.constant 0.000000e+00 : f32
    %28 = vector.broadcast %cst_19 : f32 to vector<2x128xf32>
    %29 = arith.cmpf ogt, %27, %28 : vector<2x128xf32>
    %30 = math.exp %27 : vector<2x128xf32>
    %cst_20 = arith.constant 1.000000e+00 : f32
    %31 = vector.broadcast %cst_20 : f32 to vector<2x128xf32>
    %32 = arith.subf %30, %31 : vector<2x128xf32>
    %33 = arith.select %29, %27, %32 : vector<2x128xi1>, vector<2x128xf32>
    %c0_21 = arith.constant 0 : index
    %c0_22 = arith.constant 0 : index
    %34 = vector.load %arg8[%c0_21, %c0_22] : memref<128x128xf32, #tpu.memory_space<vmem>>, vector<128x128xf32>
    %cst_23 = arith.constant dense<0.000000e+00> : vector<2x128xf32>
    %35 = tpu.matmul %33, %34, %cst_23 {dimension_numbers = #tpu.dot_dimension_numbers<[1], [0], [0], [1], [0, 0, 1, 1], [], []>} : vector<2x128xf32>, vector<128x128xf32>, vector<2x128xf32> -> vector<2x128xf32>
    %c0_24 = arith.constant 0 : index
    %c0_25 = arith.constant 0 : index
    %36 = vector.load %arg9[%c0_24, %c0_25] : memref<1x128xf32, #tpu.memory_space<vmem>>, vector<1x128xf32>
    %37 = vector.broadcast %36 : vector<1x128xf32> to vector<2x128xf32>
    %38 = arith.addf %35, %37 : vector<2x128xf32>
    %cst_26 = arith.constant 0.000000e+00 : f32
    %39 = vector.broadcast %cst_26 : f32 to vector<2x128xf32>
    %40 = arith.cmpf ogt, %38, %39 : vector<2x128xf32>
    %41 = math.exp %38 : vector<2x128xf32>
    %cst_27 = arith.constant 1.000000e+00 : f32
    %42 = vector.broadcast %cst_27 : f32 to vector<2x128xf32>
    %43 = arith.subf %41, %42 : vector<2x128xf32>
    %44 = arith.select %40, %38, %43 : vector<2x128xi1>, vector<2x128xf32>
    %c0_28 = arith.constant 0 : index
    %c0_29 = arith.constant 0 : index
    %45 = vector.load %arg10[%c0_28, %c0_29] : memref<128x128xf32, #tpu.memory_space<vmem>>, vector<128x128xf32>
    %cst_30 = arith.constant dense<0.000000e+00> : vector<2x128xf32>
    %46 = tpu.matmul %44, %45, %cst_30 {dimension_numbers = #tpu.dot_dimension_numbers<[1], [0], [0], [1], [0, 0, 1, 1], [], []>} : vector<2x128xf32>, vector<128x128xf32>, vector<2x128xf32> -> vector<2x128xf32>
    %c0_31 = arith.constant 0 : index
    %c0_32 = arith.constant 0 : index
    %47 = vector.load %arg11[%c0_31, %c0_32] : memref<1x128xf32, #tpu.memory_space<vmem>>, vector<1x128xf32>
    %48 = vector.broadcast %47 : vector<1x128xf32> to vector<2x128xf32>
    %49 = arith.addf %46, %48 : vector<2x128xf32>
    %c0_33 = arith.constant 0 : index
    %c0_34 = arith.constant 0 : index
    %50 = vector.load %arg12[%c0_33, %c0_34] : memref<2x128xf32, #tpu.memory_space<vmem>>, vector<2x128xf32>
    tpu.vector_store %arg12[%c0_33, %c0_34], %49 {strides = array<i32>} : memref<2x128xf32, #tpu.memory_space<vmem>>, vector<2x128xf32>,
    return
  }
  func.func @transform_0(%arg0: i32) -> (i32, i32) {
    %c0_i32 = arith.constant 0 : i32
    %c0_i32_0 = arith.constant 0 : i32
    return %arg0, %c0_i32 : i32, i32
  }
  func.func @transform_1(%arg0: i32) -> (i32, i32) {
    %c0_i32 = arith.constant 0 : i32
    %c0_i32_0 = arith.constant 0 : i32
    %c0_i32_1 = arith.constant 0 : i32
    return %c0_i32, %c0_i32_0 : i32, i32
  }
  func.func @transform_2(%arg0: i32) -> (i32, i32) {
    %c0_i32 = arith.constant 0 : i32
    %c0_i32_0 = arith.constant 0 : i32
    %c0_i32_1 = arith.constant 0 : i32
    return %c0_i32, %c0_i32_0 : i32, i32
  }
  func.func @transform_3(%arg0: i32) -> (i32, i32) {
    %c0_i32 = arith.constant 0 : i32
    %c0_i32_0 = arith.constant 0 : i32
    %c0_i32_1 = arith.constant 0 : i32
    return %c0_i32, %c0_i32_0 : i32, i32
  }
  func.func @transform_4(%arg0: i32) -> (i32, i32) {
    %c0_i32 = arith.constant 0 : i32
    %c0_i32_0 = arith.constant 0 : i32
    %c0_i32_1 = arith.constant 0 : i32
    return %c0_i32, %c0_i32_0 : i32, i32
  }
  func.func @transform_5(%arg0: i32) -> (i32, i32) {
    %c0_i32 = arith.constant 0 : i32
    %c0_i32_0 = arith.constant 0 : i32
    %c0_i32_1 = arith.constant 0 : i32
    return %c0_i32, %c0_i32_0 : i32, i32
  }
  func.func @transform_6(%arg0: i32) -> (i32, i32) {
    %c0_i32 = arith.constant 0 : i32
    %c0_i32_0 = arith.constant 0 : i32
    %c0_i32_1 = arith.constant 0 : i32
    return %c0_i32, %c0_i32_0 : i32, i32
  }
  func.func @transform_7(%arg0: i32) -> (i32, i32) {
    %c0_i32 = arith.constant 0 : i32
    %c0_i32_0 = arith.constant 0 : i32
    %c0_i32_1 = arith.constant 0 : i32
    return %c0_i32, %c0_i32_0 : i32, i32
  }
  func.func @transform_8(%arg0: i32) -> (i32, i32) {
    %c0_i32 = arith.constant 0 : i32
    %c0_i32_0 = arith.constant 0 : i32
    %c0_i32_1 = arith.constant 0 : i32
    return %c0_i32, %c0_i32_0 : i32, i32
  }
  func.func @transform_9(%arg0: i32) -> (i32, i32) {
    %c0_i32 = arith.constant 0 : i32
    %c0_i32_0 = arith.constant 0 : i32
    %c0_i32_1 = arith.constant 0 : i32
    return %c0_i32, %c0_i32_0 : i32, i32
  }
  func.func @transform_10(%arg0: i32) -> (i32, i32) {
    %c0_i32 = arith.constant 0 : i32
    %c0_i32_0 = arith.constant 0 : i32
    %c0_i32_1 = arith.constant 0 : i32
    return %c0_i32, %c0_i32_0 : i32, i32
  }
  func.func @transform_11(%arg0: i32) -> (i32, i32) {
    %c0_i32 = arith.constant 0 : i32
    %c0_i32_0 = arith.constant 0 : i32
    return %arg0, %c0_i32 : i32, i32
  }
}

</mosaic_0001>

<llo_original>
// kernel: _darionet_call.1
$region0: #{_darionet_call.1}
  #allocation0 [shape = 'u32[]', space=smem, size = 0x4, offset = 0x4, fixed_abs, tag = 'smem constant byte address 0x4 - core index']
  #allocation1 [shape = 'u32[144,128]{1,0:T(1,128)}', space=vmem, size = 0x12000, scoped, tag = 'internal scratch']
  %s0 = inlined_call_operand.vmem [shape: f32[2,32], index: 0, kind: input, shape index: {}]
  %s1 = inlined_call_operand.hbm [shape: f32[32,128], index: 1, kind: input, shape index: {}]
  %s2 = inlined_call_operand.vmem [shape: f32[1,128], index: 2, kind: input, shape index: {}]
  %s3 = inlined_call_operand.hbm [shape: f32[128,128], index: 3, kind: input, shape index: {}]
  %s4 = inlined_call_operand.vmem [shape: f32[1,128], index: 4, kind: input, shape index: {}]
  %s5 = inlined_call_operand.hbm [shape: f32[128,128], index: 5, kind: input, shape index: {}]
  %s6 = inlined_call_operand.vmem [shape: f32[1,128], index: 6, kind: input, shape index: {}]
  %s7 = inlined_call_operand.hbm [shape: f32[128,128], index: 7, kind: input, shape index: {}]
  %s8 = inlined_call_operand.vmem [shape: f32[1,128], index: 8, kind: input, shape index: {}]
  %s9 = inlined_call_operand.hbm [shape: f32[128,128], index: 9, kind: input, shape index: {}]
  %s10 = inlined_call_operand.vmem [shape: f32[1,128], index: 10, kind: input, shape index: {}]
  %s11 = inlined_call_operand.vmem [shape: f32[2,128], index: 11, kind: output, shape index: {}]
  %s12 = sld [smem:[#allocation0]]
  $region74: #{_darionet_call.1} parent=0
    _
  %s14 = ssub.s32 1, %s12
  %s15 = scalar_select 0, %s14, %s12
  $region1: #{_darionet_call.1} parent=0
    #allocation2 [shape = 'u8[16384]{0}', space=vmem, size = 0x4000, scoped, tag = 'input window, operand 1, single buffered']
    #allocation3 [shape = 's32[1]{0}', space=sflag, size = 0x4, scoped, tag = 'scoped memory for _darionet_call.1']
    #allocation4 [shape = 'u8[65536]{0}', space=vmem, size = 0x10000, scoped, tag = 'input window, operand 3, single buffered']
    #allocation5 [shape = 's32[1]{0}', space=sflag, size = 0x4, scoped, tag = 'scoped memory for _darionet_call.1']
    #allocation6 [shape = 'u8[65536]{0}', space=vmem, size = 0x10000, scoped, tag = 'input window, operand 5, single buffered']
    #allocation7 [shape = 'u8[65536]{0}', space=vmem, size = 0x10000, scoped, tag = 'input window, operand 7, single buffered']
    #allocation8 [shape = 's32[1]{0}', space=sflag, size = 0x4, scoped, tag = 'scoped memory for _darionet_call.1']
    #allocation9 [shape = 'u8[65536]{0}', space=vmem, size = 0x10000, scoped, tag = 'input window, operand 9, single buffered']
    %16 = vsyncpa [#allocation3], 0
    %17 = vsyncpa [#allocation5], 0
    %18 = vsyncpa [#allocation8], 0
    // Predicated region
    $region2: #{_darionet_call.1} parent=1 // pred_check
      _
    $region3: #{_darionet_call.1} parent=1 // pred_check_branch
      %20 = sbr.rel (0) target = $region5
    $region4: #{_darionet_call.1} parent=1 // pred_region
      _
    $region5: #{_darionet_call.1} parent=1 // pred_fallthru
      _
    // Predicated region
    $region6: #{_darionet_call.1} parent=1 // pred_check
      _
    $region7: #{_darionet_call.1} parent=1 // pred_check_branch
      %22 = sbr.rel (0) target = $region9
    $region8: #{_darionet_call.1} parent=1 // pred_region
      %s24 = ssub.s32 512, 512
      %25 = vsyncadd [#allocation3], %s24
      %s26 = sshll.u32 [#allocation2], 4
      %s27 = int_to_ptr.vmem [resolvable:$true] %s26
      %32 = dma.hbm_to_vmem [thread:$0]  %s1, 512, %s27, [#allocation3], 128, 128, 8
    $region9: #{_darionet_call.1} parent=1 // pred_fallthru
      _
    // Predicated region
    $region10: #{_darionet_call.1} parent=1 // pred_check
      _
    $region11: #{_darionet_call.1} parent=1 // pred_check_branch
      %34 = sbr.rel (0) target = $region13
    $region12: #{_darionet_call.1} parent=1 // pred_region
      _
    $region13: #{_darionet_call.1} parent=1 // pred_fallthru
      _
    // Predicated region
    $region14: #{_darionet_call.1} parent=1 // pred_check
      _
    $region15: #{_darionet_call.1} parent=1 // pred_check_branch
      %36 = sbr.rel (0) target = $region17
    $region16: #{_darionet_call.1} parent=1 // pred_region
      %s38 = ssub.s32 2048, 2048
      %39 = vsyncadd [#allocation5], %s38
      %s40 = sshll.u32 [#allocation4], 4
      %s41 = int_to_ptr.vmem [resolvable:$true] %s40
      %46 = dma.hbm_to_vmem [thread:$0]  %s3, 2048, %s41, [#allocation5], 128, 128, 8
    $region17: #{_darionet_call.1} parent=1 // pred_fallthru
      _
    // Predicated region
    $region18: #{_darionet_call.1} parent=1 // pred_check
      _
    $region19: #{_darionet_call.1} parent=1 // pred_check_branch
      %48 = sbr.rel (0) target = $region21
    $region20: #{_darionet_call.1} parent=1 // pred_region
      _
    $region21: #{_darionet_call.1} parent=1 // pred_fallthru
      _
    // Predicated region
    $region22: #{_darionet_call.1} parent=1 // pred_check
      _
    $region23: #{_darionet_call.1} parent=1 // pred_check_branch
      %50 = sbr.rel (0) target = $region25
    $region24: #{_darionet_call.1} parent=1 // pred_region
      %s52 = ssub.s32 2048, 2048
      %53 = vsyncadd [#allocation5], %s52
      %s54 = sshll.u32 [#allocation6], 4
      %s55 = int_to_ptr.vmem [resolvable:$true] %s54
      %60 = dma.hbm_to_vmem [thread:$0]  %s5, 2048, %s55, [#allocation5], 128, 128, 8
    $region25: #{_darionet_call.1} parent=1 // pred_fallthru
      _
    // Predicated region
    $region26: #{_darionet_call.1} parent=1 // pred_check
      _
    $region27: #{_darionet_call.1} parent=1 // pred_check_branch
      %62 = sbr.rel (0) target = $region29
    $region28: #{_darionet_call.1} parent=1 // pred_region
      _
    $region29: #{_darionet_call.1} parent=1 // pred_fallthru
      _
    // Predicated region
    $region30: #{_darionet_call.1} parent=1 // pred_check
      _
    $region31: #{_darionet_call.1} parent=1 // pred_check_branch
      %64 = sbr.rel (0) target = $region33
    $region32: #{_darionet_call.1} parent=1 // pred_region
      %s66 = ssub.s32 2048, 2048
      %67 = vsyncadd [#allocation8], %s66
      %s68 = sshll.u32 [#allocation7], 4
      %s69 = int_to_ptr.vmem [resolvable:$true] %s68
      %74 = dma.hbm_to_vmem [thread:$0]  %s7, 2048, %s69, [#allocation8], 128, 128, 8
    $region33: #{_darionet_call.1} parent=1 // pred_fallthru
      _
    // Predicated region
    $region34: #{_darionet_call.1} parent=1 // pred_check
      _
    $region35: #{_darionet_call.1} parent=1 // pred_check_branch
      %76 = sbr.rel (0) target = $region37
    $region36: #{_darionet_call.1} parent=1 // pred_region
      _
    $region37: #{_darionet_call.1} parent=1 // pred_fallthru
      _
    // Predicated region
    $region38: #{_darionet_call.1} parent=1 // pred_check
      _
    $region39: #{_darionet_call.1} parent=1 // pred_check_branch
      %78 = sbr.rel (0) target = $region41
    $region40: #{_darionet_call.1} parent=1 // pred_region
      %s80 = ssub.s32 2048, 2048
      %81 = vsyncadd [#allocation8], %s80
      %s82 = sshll.u32 [#allocation9], 4
      %s83 = int_to_ptr.vmem [resolvable:$true] %s82
      %88 = dma.hbm_to_vmem [thread:$0]  %s9, 2048, %s83, [#allocation8], 128, 128, 8
    $region41: #{_darionet_call.1} parent=1 // pred_fallthru
      _
    // Predicated region
    $region42: #{_darionet_call.1} parent=1 // pred_check
      _
    $region43: #{_darionet_call.1} parent=1 // pred_check_branch
      %90 = sbr.rel (0) target = $region45
    $region44: #{_darionet_call.1} parent=1 // pred_region
      _
    $region45: #{_darionet_call.1} parent=1 // pred_fallthru
      _
    // Predicated region
    $region46: #{_darionet_call.1} parent=1 // pred_check
      _
    $region47: #{_darionet_call.1} parent=1 // pred_check_branch
      %92 = sbr.rel (0) target = $region49
    $region48: #{_darionet_call.1} parent=1 // pred_region
      %93 = dma.done [#allocation3], 512
    $region49: #{_darionet_call.1} parent=1 // pred_fallthru
      _
    // Predicated region
    $region50: #{_darionet_call.1} parent=1 // pred_check
      _
    $region51: #{_darionet_call.1} parent=1 // pred_check_branch
      %95 = sbr.rel (0) target = $region53
    $region52: #{_darionet_call.1} parent=1 // pred_region
      %96 = dma.done [#allocation5], 2048
    $region53: #{_darionet_call.1} parent=1 // pred_fallthru
      _
    // Predicated region
    $region54: #{_darionet_call.1} parent=1 // pred_check
      _
    $region55: #{_darionet_call.1} parent=1 // pred_check_branch
      %98 = sbr.rel (0) target = $region57
    $region56: #{_darionet_call.1} parent=1 // pred_region
      %99 = dma.done [#allocation5], 2048
    $region57: #{_darionet_call.1} parent=1 // pred_fallthru
      _
    // Predicated region
    $region58: #{_darionet_call.1} parent=1 // pred_check
      _
    $region59: #{_darionet_call.1} parent=1 // pred_check_branch
      %101 = sbr.rel (0) target = $region61
    $region60: #{_darionet_call.1} parent=1 // pred_region
      %102 = dma.done [#allocation8], 2048
    $region61: #{_darionet_call.1} parent=1 // pred_fallthru
      _
    // Predicated region
    $region62: #{_darionet_call.1} parent=1 // pred_check
      _
    $region63: #{_darionet_call.1} parent=1 // pred_check_branch
      %104 = sbr.rel (0) target = $region65
    $region64: #{_darionet_call.1} parent=1 // pred_region
      %105 = dma.done [#allocation8], 2048
    $region65: #{_darionet_call.1} parent=1 // pred_fallthru
      _
    %v106 = vld [vmem:[%s0] sm:$0x3]
    %v107 = vld [vmem:[#allocation2] sm:$0xff]
    %v108 = vld [vmem:[#allocation2 + $0x8] sm:$0xff]
    %v109 = vld [vmem:[#allocation2 + $0x10] sm:$0xff]
    %v110 = vld [vmem:[#allocation2 + $0x18] sm:$0xff]
    %v111 = vld [vmem:[%s2] sm:$0x1]
    %v113 = vlaneseq
    %v114 = vshrl.u32 %v113, 7
    %v115 = vsub.s32 0, %v114
    %v116 = vrot.slane %v111, %v115
    %vm118 = vcmask 261120
    %v120 = vsel %vm118, %v106, 0
    %122 = vmatprep.subr.mxu0 0.0
    %123 = vmatpush1.msra.mxu0 %v107
    %124 = vmatprep.subr.mxu0 0.0
    %125 = vmatpush1.msra.mxu0 %v108
    %126 = vmatprep.subr.mxu0 0.0
    %127 = vmatpush1.msra.mxu0 %v109
    %128 = vmatprep.subr.mxu0 0.0
    %129 = vmatpush1.msra.mxu0 %v110
    %130 = vmatprep.subr.mxu0 0.0
    %131 = vmatpush1.msra.mxu0 0.0
    %132 = vmatprep.subr.mxu0 0.0
    %133 = vmatpush1.msra.mxu0 0.0
    %134 = vmatprep.subr.mxu0 0.0
    %135 = vmatpush1.msra.mxu0 0.0
    %136 = vmatprep.subr.mxu0 0.0
    %137 = vmatpush1.msra.mxu0 0.0
    %138 = vmatprep.subr.mxu0 0.0
    %139 = vmatpush1.msra.mxu0 0.0
    %140 = vmatprep.subr.mxu0 0.0
    %141 = vmatpush1.msra.mxu0 0.0
    %142 = vmatprep.subr.mxu0 0.0
    %143 = vmatpush1.msra.mxu0 0.0
    %144 = vmatprep.subr.mxu0 0.0
    %145 = vmatpush1.msra.mxu0 0.0
    %146 = vmatprep.subr.mxu0 0.0
    %147 = vmatpush1.msra.mxu0 0.0
    %148 = vmatprep.subr.mxu0 0.0
    %149 = vmatpush1.msra.mxu0 0.0
    %150 = vmatprep.subr.mxu0 0.0
    %151 = vmatpush1.msra.mxu0 0.0
    %152 = vmatprep.subr.mxu0 0.0
    %153 = vmatpush1.msra.mxu0 0.0
    %154 = vmatprep.subr.mxu0 0.0
    %155 = vmatpush1.msra.mxu0 0.0
    %156 = vmatprep.subr.mxu0 0.0
    %157 = vmatpush1.msra.mxu0 0.0
    %158 = vmatprep.subr.mxu0 0.0
    %159 = vmatpush1.msra.mxu0 0.0
    %160 = vmatprep.subr.mxu0 0.0
    %161 = vmatpush1.msra.mxu0 0.0
    %162 = vmatprep.subr.mxu0 0.0
    %163 = vmatpush1.msra.mxu0 0.0
    %164 = vmatprep.subr.mxu0 0.0
    %165 = vmatpush1.msra.mxu0 0.0
    %166 = vmatprep.subr.mxu0 0.0
    %167 = vmatpush1.msra.mxu0 0.0
    %168 = vmatprep.subr.mxu0 0.0
    %169 = vmatpush1.msra.mxu0 0.0
    %170 = vmatprep.subr.mxu0 0.0
    %171 = vmatpush1.msra.mxu0 0.0
    %172 = vmatprep.subr.mxu0 0.0
    %173 = vmatpush1.msra.mxu0 0.0
    %174 = vmatprep.subr.mxu0 0.0
    %175 = vmatpush1.msra.mxu0 0.0
    %176 = vmatprep.subr.mxu0 0.0
    %177 = vmatpush1.msra.mxu0 0.0
    %178 = vmatprep.subr.mxu0 0.0
    %179 = vmatpush1.msra.mxu0 0.0
    %180 = vmatprep.subr.mxu0 0.0
    %181 = vmatpush1.msra.mxu0 0.0
    %182 = vmatprep.subr.mxu0 0.0
    %183 = vmatpush1.msra.mxu0 0.0
    %184 = vmatprep.subr.mxu0 0.0
    %185 = vmatpush1.msra.mxu0 0.0
    %186 = vmatprep.mubr.f32.mxu0 0.0
    %187 = vmatmul.mubr.f32.gmra.mrb[0].mxu0 %v120
    %v188 = vpop.f32.mrb[0].mxu0
    %v189 = vadd.f32 %v116, %v188
    %v190 = vpop.f32.mrb[0].mxu0
    %191 = vdwg.mxu0
    %vm192 = vcmp.gt.f32.partialorder %v189, 0.0
    %v193 = vmul.f32 %v189, 1.442695
    %v194 = vpow.pop %v193
    %v195 = vsub.f32 %v194, 1.0
    %v196 = vsel %vm192, %v189, %v195
    %v197 = vld [vmem:[#allocation4] sm:$0xff]
    %v198 = vld [vmem:[#allocation4 + $0x8] sm:$0xff]
    %v199 = vld [vmem:[#allocation4 + $0x10] sm:$0xff]
    %v200 = vld [vmem:[#allocation4 + $0x18] sm:$0xff]
    %v201 = vld [vmem:[#allocation4 + $0x20] sm:$0xff]
    %v202 = vld [vmem:[#allocation4 + $0x28] sm:$0xff]
    %v203 = vld [vmem:[#allocation4 + $0x30] sm:$0xff]
    %v204 = vld [vmem:[#allocation4 + $0x38] sm:$0xff]
    %v205 = vld [vmem:[#allocation4 + $0x40] sm:$0xff]
    %v206 = vld [vmem:[#allocation4 + $0x48] sm:$0xff]
    %v207 = vld [vmem:[#allocation4 + $0x50] sm:$0xff]
    %v208 = vld [vmem:[#allocation4 + $0x58] sm:$0xff]
    %v209 = vld [vmem:[#allocation4 + $0x60] sm:$0xff]
    %v210 = vld [vmem:[#allocation4 + $0x68] sm:$0xff]
    %v211 = vld [vmem:[#allocation4 + $0x70] sm:$0xff]
    %v212 = vld [vmem:[#allocation4 + $0x78] sm:$0xff]
    %v213 = vld [vmem:[%s4] sm:$0x1]
    %v215 = vlaneseq
    %v216 = vshrl.u32 %v215, 7
    %v217 = vsub.s32 0, %v216
    %v218 = vrot.slane %v213, %v217
    %220 = vmatprep.subr.mxu0 0.0
    %221 = vmatpush1.msra.mxu0 %v197
    %222 = vmatprep.subr.mxu0 0.0
    %223 = vmatpush1.msra.mxu0 %v198
    %224 = vmatprep.subr.mxu0 0.0
    %225 = vmatpush1.msra.mxu0 %v199
    %226 = vmatprep.subr.mxu0 0.0
    %227 = vmatpush1.msra.mxu0 %v200
    %228 = vmatprep.subr.mxu0 0.0
    %229 = vmatpush1.msra.mxu0 %v201
    %230 = vmatprep.subr.mxu0 0.0
    %231 = vmatpush1.msra.mxu0 %v202
    %232 = vmatprep.subr.mxu0 0.0
    %233 = vmatpush1.msra.mxu0 %v203
    %234 = vmatprep.subr.mxu0 0.0
    %235 = vmatpush1.msra.mxu0 %v204
    %236 = vmatprep.subr.mxu0 0.0
    %237 = vmatpush1.msra.mxu0 %v205
    %238 = vmatprep.subr.mxu0 0.0
    %239 = vmatpush1.msra.mxu0 %v206
    %240 = vmatprep.subr.mxu0 0.0
    %241 = vmatpush1.msra.mxu0 %v207
    %242 = vmatprep.subr.mxu0 0.0
    %243 = vmatpush1.msra.mxu0 %v208
    %244 = vmatprep.subr.mxu0 0.0
    %245 = vmatpush1.msra.mxu0 %v209
    %246 = vmatprep.subr.mxu0 0.0
    %247 = vmatpush1.msra.mxu0 %v210
    %248 = vmatprep.subr.mxu0 0.0
    %249 = vmatpush1.msra.mxu0 %v211
    %250 = vmatprep.subr.mxu0 0.0
    %251 = vmatpush1.msra.mxu0 %v212
    %252 = vmatprep.subr.mxu0 0.0
    %253 = vmatpush1.msra.mxu0 0.0
    %254 = vmatprep.subr.mxu0 0.0
    %255 = vmatpush1.msra.mxu0 0.0
    %256 = vmatprep.subr.mxu0 0.0
    %257 = vmatpush1.msra.mxu0 0.0
    %258 = vmatprep.subr.mxu0 0.0
    %259 = vmatpush1.msra.mxu0 0.0
    %260 = vmatprep.subr.mxu0 0.0
    %261 = vmatpush1.msra.mxu0 0.0
    %262 = vmatprep.subr.mxu0 0.0
    %263 = vmatpush1.msra.mxu0 0.0
    %264 = vmatprep.subr.mxu0 0.0
    %265 = vmatpush1.msra.mxu0 0.0
    %266 = vmatprep.subr.mxu0 0.0
    %267 = vmatpush1.msra.mxu0 0.0
    %268 = vmatprep.subr.mxu0 0.0
    %269 = vmatpush1.msra.mxu0 0.0
    %270 = vmatprep.subr.mxu0 0.0
    %271 = vmatpush1.msra.mxu0 0.0
    %272 = vmatprep.subr.mxu0 0.0
    %273 = vmatpush1.msra.mxu0 0.0
    %274 = vmatprep.subr.mxu0 0.0
    %275 = vmatpush1.msra.mxu0 0.0
    %276 = vmatprep.subr.mxu0 0.0
    %277 = vmatpush1.msra.mxu0 0.0
    %278 = vmatprep.subr.mxu0 0.0
    %279 = vmatpush1.msra.mxu0 0.0
    %280 = vmatprep.subr.mxu0 0.0
    %281 = vmatpush1.msra.mxu0 0.0
    %282 = vmatprep.subr.mxu0 0.0
    %283 = vmatpush1.msra.mxu0 0.0
    %284 = vmatprep.mubr.f32.mxu0 0.0
    %285 = vmatmul.mubr.f32.gmra.mrb[0].mxu0 %v196
    %v286 = vpop.f32.mrb[0].mxu0
    %v287 = vadd.f32 %v218, %v286
    %v288 = vpop.f32.mrb[0].mxu0
    %289 = vdwg.mxu0
    %vm290 = vcmp.gt.f32.partialorder %v287, 0.0
    %v291 = vmul.f32 %v287, 1.442695
    %v292 = vpow.pop %v291
    %v293 = vsub.f32 %v292, 1.0
    %v294 = vsel %vm290, %v287, %v293
    %v295 = vld [vmem:[#allocation6] sm:$0xff]
    %v296 = vld [vmem:[#allocation6 + $0x8] sm:$0xff]
    %v297 = vld [vmem:[#allocation6 + $0x10] sm:$0xff]
    %v298 = vld [vmem:[#allocation6 + $0x18] sm:$0xff]
    %v299 = vld [vmem:[#allocation6 + $0x20] sm:$0xff]
    %v300 = vld [vmem:[#allocation6 + $0x28] sm:$0xff]
    %v301 = vld [vmem:[#allocation6 + $0x30] sm:$0xff]
    %v302 = vld [vmem:[#allocation6 + $0x38] sm:$0xff]
    %v303 = vld [vmem:[#allocation6 + $0x40] sm:$0xff]
    %v304 = vld [vmem:[#allocation6 + $0x48] sm:$0xff]
    %v305 = vld [vmem:[#allocation6 + $0x50] sm:$0xff]
    %v306 = vld [vmem:[#allocation6 + $0x58] sm:$0xff]
    %v307 = vld [vmem:[#allocation6 + $0x60] sm:$0xff]
    %v308 = vld [vmem:[#allocation6 + $0x68] sm:$0xff]
    %v309 = vld [vmem:[#allocation6 + $0x70] sm:$0xff]
    %v310 = vld [vmem:[#allocation6 + $0x78] sm:$0xff]
    %v311 = vld [vmem:[%s6] sm:$0x1]
    %v313 = vlaneseq
    %v314 = vshrl.u32 %v313, 7
    %v315 = vsub.s32 0, %v314
    %v316 = vrot.slane %v311, %v315
    %318 = vmatprep.subr.mxu0 0.0
    %319 = vmatpush1.msra.mxu0 %v295
    %320 = vmatprep.subr.mxu0 0.0
    %321 = vmatpush1.msra.mxu0 %v296
    %322 = vmatprep.subr.mxu0 0.0
    %323 = vmatpush1.msra.mxu0 %v297
    %324 = vmatprep.subr.mxu0 0.0
    %325 = vmatpush1.msra.mxu0 %v298
    %326 = vmatprep.subr.mxu0 0.0
    %327 = vmatpush1.msra.mxu0 %v299
    %328 = vmatprep.subr.mxu0 0.0
    %329 = vmatpush1.msra.mxu0 %v300
    %330 = vmatprep.subr.mxu0 0.0
    %331 = vmatpush1.msra.mxu0 %v301
    %332 = vmatprep.subr.mxu0 0.0
    %333 = vmatpush1.msra.mxu0 %v302
    %334 = vmatprep.subr.mxu0 0.0
    %335 = vmatpush1.msra.mxu0 %v303
    %336 = vmatprep.subr.mxu0 0.0
    %337 = vmatpush1.msra.mxu0 %v304
    %338 = vmatprep.subr.mxu0 0.0
    %339 = vmatpush1.msra.mxu0 %v305
    %340 = vmatprep.subr.mxu0 0.0
    %341 = vmatpush1.msra.mxu0 %v306
    %342 = vmatprep.subr.mxu0 0.0
    %343 = vmatpush1.msra.mxu0 %v307
    %344 = vmatprep.subr.mxu0 0.0
    %345 = vmatpush1.msra.mxu0 %v308
    %346 = vmatprep.subr.mxu0 0.0
    %347 = vmatpush1.msra.mxu0 %v309
    %348 = vmatprep.subr.mxu0 0.0
    %349 = vmatpush1.msra.mxu0 %v310
    %350 = vmatprep.subr.mxu0 0.0
    %351 = vmatpush1.msra.mxu0 0.0
    %352 = vmatprep.subr.mxu0 0.0
    %353 = vmatpush1.msra.mxu0 0.0
    %354 = vmatprep.subr.mxu0 0.0
    %355 = vmatpush1.msra.mxu0 0.0
    %356 = vmatprep.subr.mxu0 0.0
    %357 = vmatpush1.msra.mxu0 0.0
    %358 = vmatprep.subr.mxu0 0.0
    %359 = vmatpush1.msra.mxu0 0.0
    %360 = vmatprep.subr.mxu0 0.0
    %361 = vmatpush1.msra.mxu0 0.0
    %362 = vmatprep.subr.mxu0 0.0
    %363 = vmatpush1.msra.mxu0 0.0
    %364 = vmatprep.subr.mxu0 0.0
    %365 = vmatpush1.msra.mxu0 0.0
    %366 = vmatprep.subr.mxu0 0.0
    %367 = vmatpush1.msra.mxu0 0.0
    %368 = vmatprep.subr.mxu0 0.0
    %369 = vmatpush1.msra.mxu0 0.0
    %370 = vmatprep.subr.mxu0 0.0
    %371 = vmatpush1.msra.mxu0 0.0
    %372 = vmatprep.subr.mxu0 0.0
    %373 = vmatpush1.msra.mxu0 0.0
    %374 = vmatprep.subr.mxu0 0.0
    %375 = vmatpush1.msra.mxu0 0.0
    %376 = vmatprep.subr.mxu0 0.0
    %377 = vmatpush1.msra.mxu0 0.0
    %378 = vmatprep.subr.mxu0 0.0
    %379 = vmatpush1.msra.mxu0 0.0
    %380 = vmatprep.subr.mxu0 0.0
    %381 = vmatpush1.msra.mxu0 0.0
    %382 = vmatprep.mubr.f32.mxu0 0.0
    %383 = vmatmul.mubr.f32.gmra.mrb[0].mxu0 %v294
    %v384 = vpop.f32.mrb[0].mxu0
    %v385 = vadd.f32 %v316, %v384
    %v386 = vpop.f32.mrb[0].mxu0
    %387 = vdwg.mxu0
    %vm388 = vcmp.gt.f32.partialorder %v385, 0.0
    %v389 = vmul.f32 %v385, 1.442695
    %v390 = vpow.pop %v389
    %v391 = vsub.f32 %v390, 1.0
    %v392 = vsel %vm388, %v385, %v391
    %v393 = vld [vmem:[#allocation7] sm:$0xff]
    %v394 = vld [vmem:[#allocation7 + $0x8] sm:$0xff]
    %v395 = vld [vmem:[#allocation7 + $0x10] sm:$0xff]
    %v396 = vld [vmem:[#allocation7 + $0x18] sm:$0xff]
    %v397 = vld [vmem:[#allocation7 + $0x20] sm:$0xff]
    %v398 = vld [vmem:[#allocation7 + $0x28] sm:$0xff]
    %v399 = vld [vmem:[#allocation7 + $0x30] sm:$0xff]
    %v400 = vld [vmem:[#allocation7 + $0x38] sm:$0xff]
    %v401 = vld [vmem:[#allocation7 + $0x40] sm:$0xff]
    %v402 = vld [vmem:[#allocation7 + $0x48] sm:$0xff]
    %v403 = vld [vmem:[#allocation7 + $0x50] sm:$0xff]
    %v404 = vld [vmem:[#allocation7 + $0x58] sm:$0xff]
    %v405 = vld [vmem:[#allocation7 + $0x60] sm:$0xff]
    %v406 = vld [vmem:[#allocation7 + $0x68] sm:$0xff]
    %v407 = vld [vmem:[#allocation7 + $0x70] sm:$0xff]
    %v408 = vld [vmem:[#allocation7 + $0x78] sm:$0xff]
    %v409 = vld [vmem:[%s8] sm:$0x1]
    %v411 = vlaneseq
    %v412 = vshrl.u32 %v411, 7
    %v413 = vsub.s32 0, %v412
    %v414 = vrot.slane %v409, %v413
    %416 = vmatprep.subr.mxu0 0.0
    %417 = vmatpush1.msra.mxu0 %v393
    %418 = vmatprep.subr.mxu0 0.0
    %419 = vmatpush1.msra.mxu0 %v394
    %420 = vmatprep.subr.mxu0 0.0
    %421 = vmatpush1.msra.mxu0 %v395
    %422 = vmatprep.subr.mxu0 0.0
    %423 = vmatpush1.msra.mxu0 %v396
    %424 = vmatprep.subr.mxu0 0.0
    %425 = vmatpush1.msra.mxu0 %v397
    %426 = vmatprep.subr.mxu0 0.0
    %427 = vmatpush1.msra.mxu0 %v398
    %428 = vmatprep.subr.mxu0 0.0
    %429 = vmatpush1.msra.mxu0 %v399
    %430 = vmatprep.subr.mxu0 0.0
    %431 = vmatpush1.msra.mxu0 %v400
    %432 = vmatprep.subr.mxu0 0.0
    %433 = vmatpush1.msra.mxu0 %v401
    %434 = vmatprep.subr.mxu0 0.0
    %435 = vmatpush1.msra.mxu0 %v402
    %436 = vmatprep.subr.mxu0 0.0
    %437 = vmatpush1.msra.mxu0 %v403
    %438 = vmatprep.subr.mxu0 0.0
    %439 = vmatpush1.msra.mxu0 %v404
    %440 = vmatprep.subr.mxu0 0.0
    %441 = vmatpush1.msra.mxu0 %v405
    %442 = vmatprep.subr.mxu0 0.0
    %443 = vmatpush1.msra.mxu0 %v406
    %444 = vmatprep.subr.mxu0 0.0
    %445 = vmatpush1.msra.mxu0 %v407
    %446 = vmatprep.subr.mxu0 0.0
    %447 = vmatpush1.msra.mxu0 %v408
    %448 = vmatprep.subr.mxu0 0.0
    %449 = vmatpush1.msra.mxu0 0.0
    %450 = vmatprep.subr.mxu0 0.0
    %451 = vmatpush1.msra.mxu0 0.0
    %452 = vmatprep.subr.mxu0 0.0
    %453 = vmatpush1.msra.mxu0 0.0
    %454 = vmatprep.subr.mxu0 0.0
    %455 = vmatpush1.msra.mxu0 0.0
    %456 = vmatprep.subr.mxu0 0.0
    %457 = vmatpush1.msra.mxu0 0.0
    %458 = vmatprep.subr.mxu0 0.0
    %459 = vmatpush1.msra.mxu0 0.0
    %460 = vmatprep.subr.mxu0 0.0
    %461 = vmatpush1.msra.mxu0 0.0
    %462 = vmatprep.subr.mxu0 0.0
    %463 = vmatpush1.msra.mxu0 0.0
    %464 = vmatprep.subr.mxu0 0.0
    %465 = vmatpush1.msra.mxu0 0.0
    %466 = vmatprep.subr.mxu0 0.0
    %467 = vmatpush1.msra.mxu0 0.0
    %468 = vmatprep.subr.mxu0 0.0
    %469 = vmatpush1.msra.mxu0 0.0
    %470 = vmatprep.subr.mxu0 0.0
    %471 = vmatpush1.msra.mxu0 0.0
    %472 = vmatprep.subr.mxu0 0.0
    %473 = vmatpush1.msra.mxu0 0.0
    %474 = vmatprep.subr.mxu0 0.0
    %475 = vmatpush1.msra.mxu0 0.0
    %476 = vmatprep.subr.mxu0 0.0
    %477 = vmatpush1.msra.mxu0 0.0
    %478 = vmatprep.subr.mxu0 0.0
    %479 = vmatpush1.msra.mxu0 0.0
    %480 = vmatprep.mubr.f32.mxu0 0.0
    %481 = vmatmul.mubr.f32.gmra.mrb[0].mxu0 %v392
    %v482 = vpop.f32.mrb[0].mxu0
    %v483 = vadd.f32 %v414, %v482
    %v484 = vpop.f32.mrb[0].mxu0
    %485 = vdwg.mxu0
    %vm486 = vcmp.gt.f32.partialorder %v483, 0.0
    %v487 = vmul.f32 %v483, 1.442695
    %v488 = vpow.pop %v487
    %v489 = vsub.f32 %v488, 1.0
    %v490 = vsel %vm486, %v483, %v489
    %v491 = vld [vmem:[#allocation9] sm:$0xff]
    %v492 = vld [vmem:[#allocation9 + $0x8] sm:$0xff]
    %v493 = vld [vmem:[#allocation9 + $0x10] sm:$0xff]
    %v494 = vld [vmem:[#allocation9 + $0x18] sm:$0xff]
    %v495 = vld [vmem:[#allocation9 + $0x20] sm:$0xff]
    %v496 = vld [vmem:[#allocation9 + $0x28] sm:$0xff]
    %v497 = vld [vmem:[#allocation9 + $0x30] sm:$0xff]
    %v498 = vld [vmem:[#allocation9 + $0x38] sm:$0xff]
    %v499 = vld [vmem:[#allocation9 + $0x40] sm:$0xff]
    %v500 = vld [vmem:[#allocation9 + $0x48] sm:$0xff]
    %v501 = vld [vmem:[#allocation9 + $0x50] sm:$0xff]
    %v502 = vld [vmem:[#allocation9 + $0x58] sm:$0xff]
    %v503 = vld [vmem:[#allocation9 + $0x60] sm:$0xff]
    %v504 = vld [vmem:[#allocation9 + $0x68] sm:$0xff]
    %v505 = vld [vmem:[#allocation9 + $0x70] sm:$0xff]
    %v506 = vld [vmem:[#allocation9 + $0x78] sm:$0xff]
    %v507 = vld [vmem:[%s10] sm:$0x1]
    %v509 = vlaneseq
    %v510 = vshrl.u32 %v509, 7
    %v511 = vsub.s32 0, %v510
    %v512 = vrot.slane %v507, %v511
    %514 = vmatprep.subr.mxu0 0.0
    %515 = vmatpush1.msra.mxu0 %v491
    %516 = vmatprep.subr.mxu0 0.0
    %517 = vmatpush1.msra.mxu0 %v492
    %518 = vmatprep.subr.mxu0 0.0
    %519 = vmatpush1.msra.mxu0 %v493
    %520 = vmatprep.subr.mxu0 0.0
    %521 = vmatpush1.msra.mxu0 %v494
    %522 = vmatprep.subr.mxu0 0.0
    %523 = vmatpush1.msra.mxu0 %v495
    %524 = vmatprep.subr.mxu0 0.0
    %525 = vmatpush1.msra.mxu0 %v496
    %526 = vmatprep.subr.mxu0 0.0
    %527 = vmatpush1.msra.mxu0 %v497
    %528 = vmatprep.subr.mxu0 0.0
    %529 = vmatpush1.msra.mxu0 %v498
    %530 = vmatprep.subr.mxu0 0.0
    %531 = vmatpush1.msra.mxu0 %v499
    %532 = vmatprep.subr.mxu0 0.0
    %533 = vmatpush1.msra.mxu0 %v500
    %534 = vmatprep.subr.mxu0 0.0
    %535 = vmatpush1.msra.mxu0 %v501
    %536 = vmatprep.subr.mxu0 0.0
    %537 = vmatpush1.msra.mxu0 %v502
    %538 = vmatprep.subr.mxu0 0.0
    %539 = vmatpush1.msra.mxu0 %v503
    %540 = vmatprep.subr.mxu0 0.0
    %541 = vmatpush1.msra.mxu0 %v504
    %542 = vmatprep.subr.mxu0 0.0
    %543 = vmatpush1.msra.mxu0 %v505
    %544 = vmatprep.subr.mxu0 0.0
    %545 = vmatpush1.msra.mxu0 %v506
    %546 = vmatprep.subr.mxu0 0.0
    %547 = vmatpush1.msra.mxu0 0.0
    %548 = vmatprep.subr.mxu0 0.0
    %549 = vmatpush1.msra.mxu0 0.0
    %550 = vmatprep.subr.mxu0 0.0
    %551 = vmatpush1.msra.mxu0 0.0
    %552 = vmatprep.subr.mxu0 0.0
    %553 = vmatpush1.msra.mxu0 0.0
    %554 = vmatprep.subr.mxu0 0.0
    %555 = vmatpush1.msra.mxu0 0.0
    %556 = vmatprep.subr.mxu0 0.0
    %557 = vmatpush1.msra.mxu0 0.0
    %558 = vmatprep.subr.mxu0 0.0
    %559 = vmatpush1.msra.mxu0 0.0
    %560 = vmatprep.subr.mxu0 0.0
    %561 = vmatpush1.msra.mxu0 0.0
    %562 = vmatprep.subr.mxu0 0.0
    %563 = vmatpush1.msra.mxu0 0.0
    %564 = vmatprep.subr.mxu0 0.0
    %565 = vmatpush1.msra.mxu0 0.0
    %566 = vmatprep.subr.mxu0 0.0
    %567 = vmatpush1.msra.mxu0 0.0
    %568 = vmatprep.subr.mxu0 0.0
    %569 = vmatpush1.msra.mxu0 0.0
    %570 = vmatprep.subr.mxu0 0.0
    %571 = vmatpush1.msra.mxu0 0.0
    %572 = vmatprep.subr.mxu0 0.0
    %573 = vmatpush1.msra.mxu0 0.0
    %574 = vmatprep.subr.mxu0 0.0
    %575 = vmatpush1.msra.mxu0 0.0
    %576 = vmatprep.subr.mxu0 0.0
    %577 = vmatpush1.msra.mxu0 0.0
    %578 = vmatprep.mubr.f32.mxu0 0.0
    %579 = vmatmul.mubr.f32.gmra.mrb[0].mxu0 %v490
    %v580 = vpop.f32.mrb[0].mxu0
    %v581 = vadd.f32 %v512, %v580
    %v582 = vpop.f32.mrb[0].mxu0
    %583 = vdwg.mxu0
    %584 = vst [vmem:[%s11] sm:$0x3] %v581
    // Predicated region
    $region66: #{_darionet_call.1} parent=1 // pred_check
      _
    $region67: #{_darionet_call.1} parent=1 // pred_check_branch
      %586 = sbr.rel (0) target = $region69
    $region68: #{_darionet_call.1} parent=1 // pred_region
      _
    $region69: #{_darionet_call.1} parent=1 // pred_fallthru
      _
    // Predicated region
    $region70: #{_darionet_call.1} parent=1 // pred_check
      _
    $region71: #{_darionet_call.1} parent=1 // pred_check_branch
      %588 = sbr.rel (0) target = $region73
    $region72: #{_darionet_call.1} parent=1 // pred_region
      _
    $region73: #{_darionet_call.1} parent=1 // pred_fallthru
      _
    %589 = vsyncpa [#allocation3], 1
    %590 = vsyncpa [#allocation5], 1
    %591 = vsyncpa [#allocation8], 1

</llo_original>
